<compile_context>
chip_gen: v5e
topology: v5e:2x2
jax: 0.10.0
libtpu: 0.0.40
codegen_flags: <defaults>
</compile_context>

<pallas_src>
import jax
import jax.numpy as jnp
from jax import lax
from jax.experimental import pallas as pl
from jax.experimental.pallas import tpu as pltpu

INPUT_DIM = 2
HIDDEN_DIM = 150
OUTPUT_DIM = INPUT_DIM

HIDDEN_PAD = 256   # 2 full 128-lane vregs; zero padding is inert through tanh(0)=0
OUT_PAD = 128      # lane-dense output slab; real outputs live in columns [:OUTPUT_DIM]


def _round_up(n, m):
    return ((n + m - 1) // m) * m


# ----------------------------------------------------------------------------
# Shared MLP math on plain arrays (weights already loaded/hoisted by caller).
# x: (B, OUT_PAD) f32, real inputs in columns [:INPUT_DIM].  Returns (B, OUT_PAD).
# ----------------------------------------------------------------------------
def _mlp_math(x, w1, b1, w2, b2, w3, b3):
    # Layer 1 on the VPU: a K=2 contraction would waste an MXU pass that is
    # >98% zeros.  Two broadcast FMAs instead.
    pre1 = b1                                     # (1, HIDDEN_PAD) -> broadcasts over batch
    for k in range(INPUT_DIM):                    # static unroll (2 iters)
        pre1 = pre1 + x[:, k:k + 1] * w1[k:k + 1, :]
    h1 = jnp.tanh(pre1)                           # padded lanes -> tanh(0) = 0

    # Layer 2 on the MXU, f32 accumulation.  Padded rows/cols of w2 are zero.
    h2 = jnp.tanh(jnp.dot(h1, w2, preferred_element_type=jnp.float32) + b2)

    # Layer 3 on the MXU into the lane-dense OUT_PAD slab (columns >= 2 stay 0).
    return jnp.dot(h2, w3, preferred_element_type=jnp.float32) + b3


# ----------------------------------------------------------------------------
# Single forward pass (module semantics: forward(t, x) = net(x)), batch-tiled.
# ----------------------------------------------------------------------------
def node_mlp_kernel(x_ref, w1_ref, b1_ref, w2_ref, b2_ref, w3_ref, b3_ref, o_ref):
    o_ref[...] = _mlp_math(
        x_ref[...], w1_ref[...], b1_ref[...], w2_ref[...], b2_ref[...],
        w3_ref[...], b3_ref[...],
    ).astype(o_ref.dtype)


def node_forward(t, x, padded_params, *, batch_tile=512):
    """Pallas-backed equivalent of NODE.forward(t, x). `t` is unused, as in the reference."""
    del t
    w1p, b1p, w2p, b2p, w3p, b3p = padded_params
    B = x.shape[0]

    # Choose a batch tile that is a multiple of 8 and pad B up to a multiple of it.
    tb = min(max(8, _round_up(B, 8)), _round_up(batch_tile, 8))
    Bp = _round_up(max(B, tb), tb)
    n_blk = Bp // tb

    # Lane-dense, row-aligned input slab (zeros outside the real data).
    xp = jnp.zeros((Bp, OUT_PAD), jnp.float32).at[:B, :INPUT_DIM].set(
        x.astype(jnp.float32)
    )

    flops = 2 * Bp * (INPUT_DIM * HIDDEN_PAD + HIDDEN_PAD * HIDDEN_PAD
                      + HIDDEN_PAD * OUT_PAD)
    transcendentals = 2 * Bp * HIDDEN_PAD
    bytes_accessed = 4 * (
        2 * Bp * OUT_PAD
        + INPUT_DIM * HIDDEN_PAD + HIDDEN_PAD
        + HIDDEN_PAD * HIDDEN_PAD + HIDDEN_PAD
        + HIDDEN_PAD * OUT_PAD + OUT_PAD
    )

    out = pl.pallas_call(
        node_mlp_kernel,
        out_shape=jax.ShapeDtypeStruct((Bp, OUT_PAD), jnp.float32),
        grid=(n_blk,),
        in_specs=[
            pl.BlockSpec((tb, OUT_PAD), lambda i: (i, 0)),            # x (batch-tiled)
            pl.BlockSpec((INPUT_DIM, HIDDEN_PAD), lambda i: (0, 0)),  # w1 (resident)
            pl.BlockSpec((1, HIDDEN_PAD), lambda i: (0, 0)),          # b1
            pl.BlockSpec((HIDDEN_PAD, HIDDEN_PAD), lambda i: (0, 0)), # w2
            pl.BlockSpec((1, HIDDEN_PAD), lambda i: (0, 0)),          # b2
            pl.BlockSpec((HIDDEN_PAD, OUT_PAD), lambda i: (0, 0)),    # w3
            pl.BlockSpec((1, OUT_PAD), lambda i: (0, 0)),             # b3
        ],
        out_specs=pl.BlockSpec((tb, OUT_PAD), lambda i: (i, 0)),
        compiler_params=pltpu.CompilerParams(dimension_semantics=("parallel",)),
        cost_estimate=pl.CostEstimate(
            flops=flops, transcendentals=transcendentals,
            bytes_accessed=bytes_accessed,
        ),
    )(xp, w1p, b1p, w2p, b2p, w3p, b3p)

    return out[:B, :OUTPUT_DIM]


# ----------------------------------------------------------------------------
# Fused fixed-step Euler rollout: N forward evaluations in ONE gridless
# pallas_call.  Weights are DMA'd into VMEM once, loaded into locals once,
# and the ODE state is carried as a loop value in an unrolled fori_loop.
# Each loop iteration applies exactly one module forward: x <- x + dt * net(x).
# ----------------------------------------------------------------------------
def node_euler_rollout(x0, padded_params, *, dt, n_steps, unroll=True):
    w1p, b1p, w2p, b2p, w3p, b3p = padded_params
    B = x0.shape[0]
    Bp = max(8, _round_up(B, 8))
    dt_f = float(dt)        # static step size, closed over by the kernel
    n_steps = int(n_steps)  # static trip count

    xp = jnp.zeros((Bp, OUT_PAD), jnp.float32).at[:B, :INPUT_DIM].set(
        x0.astype(jnp.float32)
    )

    def euler_kernel(x_ref, w1_ref, b1_ref, w2_ref, b2_ref, w3_ref, b3_ref, o_ref):
        # Hoist weight/bias loads out of the step loop (loaded from VMEM once).
        w1 = w1_ref[...]
        b1 = b1_ref[...]
        w2 = w2_ref[...]
        b2 = b2_ref[...]
        w3 = w3_ref[...]
        b3 = b3_ref[...]

        def body(_, s):
            return s + dt_f * _mlp_math(s, w1, b1, w2, b2, w3, b3)

        # Unrolled in-kernel loop: no per-step grid/pipeline overhead, and the
        # LLO scheduler sees across tanh/matmul boundaries.
        xN = lax.fori_loop(0, n_steps, body, x_ref[...], unroll=unroll)
        o_ref[...] = xN.astype(o_ref.dtype)

    flops = 2 * n_steps * Bp * (INPUT_DIM * HIDDEN_PAD + HIDDEN_PAD * HIDDEN_PAD
                                + HIDDEN_PAD * OUT_PAD)
    transcendentals = 2 * n_steps * Bp * HIDDEN_PAD
    bytes_accessed = 4 * (
        2 * Bp * OUT_PAD
        + INPUT_DIM * HIDDEN_PAD + HIDDEN_PAD
        + HIDDEN_PAD * HIDDEN_PAD + HIDDEN_PAD
        + HIDDEN_PAD * OUT_PAD + OUT_PAD
    )

    vmem_spec = pl.BlockSpec(memory_space=pltpu.MemorySpace.VMEM)
    out = pl.pallas_call(
        euler_kernel,
        out_shape=jax.ShapeDtypeStruct((Bp, OUT_PAD), jnp.float32),
        in_specs=[vmem_spec] * 7,
        out_specs=vmem_spec,
        cost_estimate=pl.CostEstimate(
            flops=flops, transcendentals=transcendentals,
            bytes_accessed=bytes_accessed,
        ),
    )(xp, w1p, b1p, w2p, b2p, w3p, b3p)

    return out[:B, :OUTPUT_DIM]


# ----------------------------------------------------------------------------
# Parameters
# ----------------------------------------------------------------------------
def init_params(key):
    """Deterministic parameter init mimicking nn.Linear's U(-1/sqrt(fan_in), +)."""
    ks = jax.random.split(key, 6)

    def lin(kw, kb, fan_in, fan_out):
        bound = 1.0 / jnp.sqrt(float(fan_in))
        w = jax.random.uniform(kw, (fan_in, fan_out), jnp.float32, -bound, bound)
        b = jax.random.uniform(kb, (1, fan_out), jnp.float32, -bound, bound)
        return w, b

    w1, b1 = lin(ks[0], ks[1], INPUT_DIM, HIDDEN_DIM)
    w2, b2 = lin(ks[2], ks[3], HIDDEN_DIM, HIDDEN_DIM)
    w3, b3 = lin(ks[4], ks[5], HIDDEN_DIM, OUTPUT_DIM)
    return (w1, b1, w2, b2, w3, b3)


def pad_params(params):
    """Zero-pad parameters once to lane-dense kernel shapes (mathematically inert)."""
    w1, b1, w2, b2, w3, b3 = params
    w1p = jnp.zeros((INPUT_DIM, HIDDEN_PAD), jnp.float32).at[:, :HIDDEN_DIM].set(w1)
    b1p = jnp.zeros((1, HIDDEN_PAD), jnp.float32).at[:, :HIDDEN_DIM].set(b1)
    w2p = jnp.zeros((HIDDEN_PAD, HIDDEN_PAD), jnp.float32).at[:HIDDEN_DIM, :HIDDEN_DIM].set(w2)
    b2p = jnp.zeros((1, HIDDEN_PAD), jnp.float32).at[:, :HIDDEN_DIM].set(b2)
    w3p = jnp.zeros((HIDDEN_PAD, OUT_PAD), jnp.float32).at[:HIDDEN_DIM, :OUTPUT_DIM].set(w3)
    b3p = jnp.zeros((1, OUT_PAD), jnp.float32).at[:, :OUTPUT_DIM].set(b3)
    return (w1p, b1p, w2p, b2p, w3p, b3p)


# ----------------------------------------------------------------------------
# Pure-JAX references
# ----------------------------------------------------------------------------
def reference_forward(x, params):
    w1, b1, w2, b2, w3, b3 = params
    h1 = jnp.tanh(x @ w1 + b1)
    h2 = jnp.tanh(h1 @ w2 + b2)
    return h2 @ w3 + b3


def reference_euler(x0, params, dt, n_steps):
    def step(x, _):
        return x + dt * reference_forward(x, params), None

    xN, _ = jax.lax.scan(step, x0, None, length=n_steps)
    return xN


if __name__ == "__main__":
    key = jax.random.PRNGKey(0)
    k_param, k_x = jax.random.split(key)

    params = init_params(k_param)
    padded = pad_params(params)

    batch = 8
    x = jax.random.normal(k_x, (batch, INPUT_DIM), dtype=jnp.float32)
    t = jnp.float32(0.0)  # ignored, matching the PyTorch forward signature

    # --- single forward pass (exact module semantics) ---
    y = jax.block_until_ready(node_forward(t, x, padded))
    y_ref = reference_forward(x, params)
    assert y.shape == (batch, OUTPUT_DIM)
    assert jnp.allclose(y, y_ref, atol=1e-4, rtol=1e-4), "forward mismatch vs JAX reference"

    # --- fused Euler rollout: 16 forward evaluations in one gridless pallas_call ---
    n_steps, dt = 16, 0.05
    xN = jax.block_until_ready(node_euler_rollout(x, padded, dt=dt, n_steps=n_steps))
    xN_ref = reference_euler(x, params, dt, n_steps)
    assert xN.shape == (batch, OUTPUT_DIM)
    assert jnp.allclose(xN, xN_ref, atol=1e-4, rtol=1e-4), "rollout mismatch vs JAX reference"

    print("KERNEL_OK")
</pallas_src>

<mosaic_0001>
module attributes {stable_mosaic.version = 11 : i64} {
  func.func @node_mlp_kernel(%arg0: i32, %arg1: memref<8x128xf32, #tpu.memory_space<vmem>>, %arg2: memref<2x256xf32, #tpu.memory_space<vmem>>, %arg3: memref<1x256xf32, #tpu.memory_space<vmem>>, %arg4: memref<256x256xf32, #tpu.memory_space<vmem>>, %arg5: memref<1x256xf32, #tpu.memory_space<vmem>>, %arg6: memref<256x128xf32, #tpu.memory_space<vmem>>, %arg7: memref<1x128xf32, #tpu.memory_space<vmem>>, %arg8: memref<8x128xf32, #tpu.memory_space<vmem>>) attributes {dimension_semantics = [#tpu.dimension_semantics<parallel>], iteration_bounds = array<i64: 1>, scalar_prefetch = 0 : i64, scratch_operands = 0 : i64, tpu.core_type = #tpu.core_type<tc>, window_params = [{transform_indices = @transform_0, window_bounds = array<i64: 8, 128>}, {pipeline_mode = #tpu.pipeline_mode<synchronous>, transform_indices = @transform_1, window_bounds = array<i64: 2, 256>}, {pipeline_mode = #tpu.pipeline_mode<synchronous>, transform_indices = @transform_2, window_bounds = array<i64: 1, 256>}, {pipeline_mode = #tpu.pipeline_mode<synchronous>, transform_indices = @transform_3, window_bounds = array<i64: 256, 256>}, {pipeline_mode = #tpu.pipeline_mode<synchronous>, transform_indices = @transform_4, window_bounds = array<i64: 1, 256>}, {pipeline_mode = #tpu.pipeline_mode<synchronous>, transform_indices = @transform_5, window_bounds = array<i64: 256, 128>}, {pipeline_mode = #tpu.pipeline_mode<synchronous>, transform_indices = @transform_6, window_bounds = array<i64: 1, 128>}, {transform_indices = @transform_7, window_bounds = array<i64: 8, 128>}]} {
    %c0 = arith.constant 0 : index
    %c0_0 = arith.constant 0 : index
    %0 = vector.load %arg1[%c0, %c0_0] : memref<8x128xf32, #tpu.memory_space<vmem>>, vector<8x128xf32>
    %c0_1 = arith.constant 0 : index
    %c0_2 = arith.constant 0 : index
    %1 = vector.load %arg2[%c0_1, %c0_2] : memref<2x256xf32, #tpu.memory_space<vmem>>, vector<2x256xf32>
    %c0_3 = arith.constant 0 : index
    %c0_4 = arith.constant 0 : index
    %2 = vector.load %arg3[%c0_3, %c0_4] : memref<1x256xf32, #tpu.memory_space<vmem>>, vector<1x256xf32>
    %c0_5 = arith.constant 0 : index
    %c0_6 = arith.constant 0 : index
    %3 = vector.load %arg4[%c0_5, %c0_6] : memref<256x256xf32, #tpu.memory_space<vmem>>, vector<256x256xf32>
    %c0_7 = arith.constant 0 : index
    %c0_8 = arith.constant 0 : index
    %4 = vector.load %arg5[%c0_7, %c0_8] : memref<1x256xf32, #tpu.memory_space<vmem>>, vector<1x256xf32>
    %c0_9 = arith.constant 0 : index
    %c0_10 = arith.constant 0 : index
    %5 = vector.load %arg6[%c0_9, %c0_10] : memref<256x128xf32, #tpu.memory_space<vmem>>, vector<256x128xf32>
    %c0_11 = arith.constant 0 : index
    %c0_12 = arith.constant 0 : index
    %6 = vector.load %arg7[%c0_11, %c0_12] : memref<1x128xf32, #tpu.memory_space<vmem>>, vector<1x128xf32>
    %7 = vector.extract_strided_slice %0 {offsets = [0, 0], sizes = [8, 1], strides = [1, 1]} : vector<8x128xf32> to vector<8x1xf32>
    %8 = vector.extract_strided_slice %1 {offsets = [0, 0], sizes = [1, 256], strides = [1, 1]} : vector<2x256xf32> to vector<1x256xf32>
    %9 = vector.broadcast %7 : vector<8x1xf32> to vector<8x256xf32>
    %10 = vector.broadcast %8 : vector<1x256xf32> to vector<8x256xf32>
    %11 = arith.mulf %9, %10 : vector<8x256xf32>
    %12 = vector.broadcast %2 : vector<1x256xf32> to vector<8x256xf32>
    %13 = arith.addf %12, %11 : vector<8x256xf32>
    %14 = vector.extract_strided_slice %0 {offsets = [0, 1], sizes = [8, 1], strides = [1, 1]} : vector<8x128xf32> to vector<8x1xf32>
    %15 = vector.extract_strided_slice %1 {offsets = [1, 0], sizes = [1, 256], strides = [1, 1]} : vector<2x256xf32> to vector<1x256xf32>
    %16 = vector.broadcast %14 : vector<8x1xf32> to vector<8x256xf32>
    %17 = vector.broadcast %15 : vector<1x256xf32> to vector<8x256xf32>
    %18 = arith.mulf %16, %17 : vector<8x256xf32>
    %19 = arith.addf %13, %18 : vector<8x256xf32>
    %20 = math.tanh %19 : vector<8x256xf32>
    %cst = arith.constant dense<0.000000e+00> : vector<8x256xf32>
    %21 = tpu.matmul %20, %3, %cst {dimension_numbers = #tpu.dot_dimension_numbers<[1], [0], [0], [1], [0, 0, 1, 1], [], []>} : vector<8x256xf32>, vector<256x256xf32>, vector<8x256xf32> -> vector<8x256xf32>
    %22 = vector.broadcast %4 : vector<1x256xf32> to vector<8x256xf32>
    %23 = arith.addf %21, %22 : vector<8x256xf32>
    %24 = math.tanh %23 : vector<8x256xf32>
    %cst_13 = arith.constant dense<0.000000e+00> : vector<8x128xf32>
    %25 = tpu.matmul %24, %5, %cst_13 {dimension_numbers = #tpu.dot_dimension_numbers<[1], [0], [0], [1], [0, 0, 1, 1], [], []>} : vector<8x256xf32>, vector<256x128xf32>, vector<8x128xf32> -> vector<8x128xf32>
    %26 = vector.broadcast %6 : vector<1x128xf32> to vector<8x128xf32>
    %27 = arith.addf %25, %26 : vector<8x128xf32>
    %c0_14 = arith.constant 0 : index
    %c0_15 = arith.constant 0 : index
    %28 = vector.load %arg8[%c0_14, %c0_15] : memref<8x128xf32, #tpu.memory_space<vmem>>, vector<8x128xf32>
    tpu.vector_store %arg8[%c0_14, %c0_15], %27 {strides = array<i32>} : memref<8x128xf32, #tpu.memory_space<vmem>>, vector<8x128xf32>,
    return
  }
  func.func @transform_0(%arg0: i32) -> (i32, i32) {
    %c0_i32 = arith.constant 0 : i32
    %c0_i32_0 = arith.constant 0 : i32
    return %arg0, %c0_i32 : i32, i32
  }
  func.func @transform_1(%arg0: i32) -> (i32, i32) {
    %c0_i32 = arith.constant 0 : i32
    %c0_i32_0 = arith.constant 0 : i32
    %c0_i32_1 = arith.constant 0 : i32
    return %c0_i32, %c0_i32_0 : i32, i32
  }
  func.func @transform_2(%arg0: i32) -> (i32, i32) {
    %c0_i32 = arith.constant 0 : i32
    %c0_i32_0 = arith.constant 0 : i32
    %c0_i32_1 = arith.constant 0 : i32
    return %c0_i32, %c0_i32_0 : i32, i32
  }
  func.func @transform_3(%arg0: i32) -> (i32, i32) {
    %c0_i32 = arith.constant 0 : i32
    %c0_i32_0 = arith.constant 0 : i32
    %c0_i32_1 = arith.constant 0 : i32
    return %c0_i32, %c0_i32_0 : i32, i32
  }
  func.func @transform_4(%arg0: i32) -> (i32, i32) {
    %c0_i32 = arith.constant 0 : i32
    %c0_i32_0 = arith.constant 0 : i32
    %c0_i32_1 = arith.constant 0 : i32
    return %c0_i32, %c0_i32_0 : i32, i32
  }
  func.func @transform_5(%arg0: i32) -> (i32, i32) {
    %c0_i32 = arith.constant 0 : i32
    %c0_i32_0 = arith.constant 0 : i32
    %c0_i32_1 = arith.constant 0 : i32
    return %c0_i32, %c0_i32_0 : i32, i32
  }
  func.func @transform_6(%arg0: i32) -> (i32, i32) {
    %c0_i32 = arith.constant 0 : i32
    %c0_i32_0 = arith.constant 0 : i32
    %c0_i32_1 = arith.constant 0 : i32
    return %c0_i32, %c0_i32_0 : i32, i32
  }
  func.func @transform_7(%arg0: i32) -> (i32, i32) {
    %c0_i32 = arith.constant 0 : i32
    %c0_i32_0 = arith.constant 0 : i32
    return %arg0, %c0_i32 : i32, i32
  }
}

</mosaic_0001>

<llo_original>
// kernel: tpu_custom_call.1
$region0: #{tpu_custom_call.1}
  #allocation0 [shape = 'u32[]', space=smem, size = 0x4, offset = 0x4, fixed_abs, tag = 'smem constant byte address 0x4 - core index']
  #allocation1 [shape = 'u32[72,128]{1,0:T(1,128)}', space=vmem, size = 0x9000, scoped, tag = 'internal scratch']
  %s0 = inlined_call_operand.hbm [shape: f32[8,128], index: 0, kind: input, shape index: {}]
  %s1 = inlined_call_operand.hbm [shape: f32[2,256], index: 1, kind: input, shape index: {}]
  %s2 = inlined_call_operand.hbm [shape: f32[1,256], index: 2, kind: input, shape index: {}]
  %s3 = inlined_call_operand.hbm [shape: f32[256,256], index: 3, kind: input, shape index: {}]
  %s4 = inlined_call_operand.vmem [shape: f32[1,256], index: 4, kind: input, shape index: {}]
  %s5 = inlined_call_operand.hbm [shape: f32[256,128], index: 5, kind: input, shape index: {}]
  %s6 = inlined_call_operand.vmem [shape: f32[1,128], index: 6, kind: input, shape index: {}]
  %s7 = inlined_call_operand.hbm [shape: f32[8,128], index: 7, kind: output, shape index: {}]
  %s8 = sld [smem:[#allocation0]]
  $region58: #{tpu_custom_call.1} parent=0
    _
  %s10 = ssub.s32 1, %s8
  %s11 = scalar_select 0, %s10, %s8
  $region1: #{tpu_custom_call.1} parent=0
    #allocation2 [shape = 'u8[4096]{0}', space=vmem, size = 0x1000, scoped, tag = 'input window, operand 0, single buffered']
    #allocation3 [shape = 's32[1]{0}', space=sflag, size = 0x4, scoped, tag = 'scoped memory for tpu_custom_call.1']
    #allocation4 [shape = 's32[1]{0}', space=sflag, size = 0x4, scoped, tag = 'scoped memory for tpu_custom_call.1']
    #allocation5 [shape = 'u8[2048]{0}', space=vmem, size = 0x800, scoped, tag = 'input window, operand 1, single buffered']
    #allocation6 [shape = 's32[1]{0}', space=sflag, size = 0x4, scoped, tag = 'scoped memory for tpu_custom_call.1']
    #allocation7 [shape = 'u8[1024]{0}', space=vmem, size = 0x400, scoped, tag = 'input window, operand 2, single buffered']
    #allocation8 [shape = 'u8[262144]{0}', space=vmem, size = 0x40000, scoped, tag = 'input window, operand 3, single buffered']
    #allocation9 [shape = 's32[1]{0}', space=sflag, size = 0x4, scoped, tag = 'scoped memory for tpu_custom_call.1']
    #allocation10 [shape = 'u8[131072]{0}', space=vmem, size = 0x20000, scoped, tag = 'input window, operand 5, single buffered']
    #allocation11 [shape = 'u8[4096]{0}', space=vmem, size = 0x1000, scoped, tag = 'output window, operand 0, single buffered']
    %12 = vsyncpa [#allocation3], 0
    %13 = vsyncpa [#allocation6], 0
    %14 = vsyncpa [#allocation9], 0
    %15 = vsyncpa [#allocation4], 0
    // Predicated region
    $region2: #{tpu_custom_call.1} parent=1 // pred_check
      _
    $region3: #{tpu_custom_call.1} parent=1 // pred_check_branch
      %17 = sbr.rel (0) target = $region5
    $region4: #{tpu_custom_call.1} parent=1 // pred_region
      %19 = vsyncadd [#allocation3], 0
      %s21 = sshll.u32 %s0, 4
      %s22 = int_to_ptr.hbm [resolvable:$true] %s21
      %s23 = sshll.u32 [#allocation2], 4
      %s24 = int_to_ptr.vmem [resolvable:$true] %s23
      %26 = dma.hbm_to_vmem [thread:$0]  %s22, 128, %s24, [#allocation3]
    $region5: #{tpu_custom_call.1} parent=1 // pred_fallthru
      _
    // Predicated region
    $region6: #{tpu_custom_call.1} parent=1 // pred_check
      _
    $region7: #{tpu_custom_call.1} parent=1 // pred_check_branch
      %28 = sbr.rel (0) target = $region9
    $region8: #{tpu_custom_call.1} parent=1 // pred_region
      %30 = vsyncadd [#allocation6], 0
      %s32 = sshll.u32 %s1, 4
      %s33 = int_to_ptr.hbm [resolvable:$true] %s32
      %s34 = sshll.u32 [#allocation5], 4
      %s35 = int_to_ptr.vmem [resolvable:$true] %s34
      %37 = dma.hbm_to_vmem [thread:$0]  %s33, 64, %s35, [#allocation6]
    $region9: #{tpu_custom_call.1} parent=1 // pred_fallthru
      _
    // Predicated region
    $region10: #{tpu_custom_call.1} parent=1 // pred_check
      _
    $region11: #{tpu_custom_call.1} parent=1 // pred_check_branch
      %39 = sbr.rel (0) target = $region13
    $region12: #{tpu_custom_call.1} parent=1 // pred_region
      %41 = vsyncadd [#allocation6], 0
      %s43 = sshll.u32 %s2, 4
      %s44 = int_to_ptr.hbm [resolvable:$true] %s43
      %s45 = sshll.u32 [#allocation7], 4
      %s46 = int_to_ptr.vmem [resolvable:$true] %s45
      %48 = dma.hbm_to_vmem [thread:$0]  %s44, 32, %s46, [#allocation6]
    $region13: #{tpu_custom_call.1} parent=1 // pred_fallthru
      _
    // Predicated region
    $region14: #{tpu_custom_call.1} parent=1 // pred_check
      _
    $region15: #{tpu_custom_call.1} parent=1 // pred_check_branch
      %50 = sbr.rel (0) target = $region17
    $region16: #{tpu_custom_call.1} parent=1 // pred_region
      %52 = vsyncadd [#allocation9], 0
      %s53 = sshll.u32 %s3, 4
      %s54 = int_to_ptr.hbm [resolvable:$true] %s53
      %s55 = sshll.u32 [#allocation8], 4
      %s56 = int_to_ptr.vmem [resolvable:$true] %s55
      %61 = dma.hbm_to_vmem [thread:$0]  %s54, 8192, %s56, [#allocation9], 256, 256, 16
    $region17: #{tpu_custom_call.1} parent=1 // pred_fallthru
      _
    // Predicated region
    $region18: #{tpu_custom_call.1} parent=1 // pred_check
      _
    $region19: #{tpu_custom_call.1} parent=1 // pred_check_branch
      %63 = sbr.rel (0) target = $region21
    $region20: #{tpu_custom_call.1} parent=1 // pred_region
      _
    $region21: #{tpu_custom_call.1} parent=1 // pred_fallthru
      _
    // Predicated region
    $region22: #{tpu_custom_call.1} parent=1 // pred_check
      _
    $region23: #{tpu_custom_call.1} parent=1 // pred_check_branch
      %65 = sbr.rel (0) target = $region25
    $region24: #{tpu_custom_call.1} parent=1 // pred_region
      %67 = vsyncadd [#allocation9], 0
      %s68 = sshll.u32 %s5, 4
      %s69 = int_to_ptr.hbm [resolvable:$true] %s68
      %s70 = sshll.u32 [#allocation10], 4
      %s71 = int_to_ptr.vmem [resolvable:$true] %s70
      %76 = dma.hbm_to_vmem [thread:$0]  %s69, 4096, %s71, [#allocation9], 128, 128, 8
    $region25: #{tpu_custom_call.1} parent=1 // pred_fallthru
      _
    // Predicated region
    $region26: #{tpu_custom_call.1} parent=1 // pred_check
      _
    $region27: #{tpu_custom_call.1} parent=1 // pred_check_branch
      %78 = sbr.rel (0) target = $region29
    $region28: #{tpu_custom_call.1} parent=1 // pred_region
      _
    $region29: #{tpu_custom_call.1} parent=1 // pred_fallthru
      _
    // Predicated region
    $region30: #{tpu_custom_call.1} parent=1 // pred_check
      _
    $region31: #{tpu_custom_call.1} parent=1 // pred_check_branch
      %80 = sbr.rel (0) target = $region33
    $region32: #{tpu_custom_call.1} parent=1 // pred_region
      %82 = dma.done [#allocation3], 128
    $region33: #{tpu_custom_call.1} parent=1 // pred_fallthru
      _
    // Predicated region
    $region34: #{tpu_custom_call.1} parent=1 // pred_check
      _
    $region35: #{tpu_custom_call.1} parent=1 // pred_check_branch
      %84 = sbr.rel (0) target = $region37
    $region36: #{tpu_custom_call.1} parent=1 // pred_region
      %86 = dma.done [#allocation6], 64
    $region37: #{tpu_custom_call.1} parent=1 // pred_fallthru
      _
    // Predicated region
    $region38: #{tpu_custom_call.1} parent=1 // pred_check
      _
    $region39: #{tpu_custom_call.1} parent=1 // pred_check_branch
      %88 = sbr.rel (0) target = $region41
    $region40: #{tpu_custom_call.1} parent=1 // pred_region
      %90 = dma.done [#allocation6], 32
    $region41: #{tpu_custom_call.1} parent=1 // pred_fallthru
      _
    // Predicated region
    $region42: #{tpu_custom_call.1} parent=1 // pred_check
      _
    $region43: #{tpu_custom_call.1} parent=1 // pred_check_branch
      %92 = sbr.rel (0) target = $region45
    $region44: #{tpu_custom_call.1} parent=1 // pred_region
      %94 = dma.done [#allocation9], 8192
    $region45: #{tpu_custom_call.1} parent=1 // pred_fallthru
      _
    // Predicated region
    $region46: #{tpu_custom_call.1} parent=1 // pred_check
      _
    $region47: #{tpu_custom_call.1} parent=1 // pred_check_branch
      %96 = sbr.rel (0) target = $region49
    $region48: #{tpu_custom_call.1} parent=1 // pred_region
      %98 = dma.done [#allocation9], 4096
    $region49: #{tpu_custom_call.1} parent=1 // pred_fallthru
      _
    %v99 = vld [vmem:[#allocation2] sm:$0xff]
    %v100 = vld [vmem:[#allocation5] sm:$0xf]
    %v101 = vld [vmem:[#allocation7] sm:$0x3]
    %v102 = vld [vmem:[#allocation8] sm:$0xff]
    %v103 = vld [vmem:[#allocation8 + $0x8] sm:$0xff]
    %v104 = vld [vmem:[#allocation8 + $0x10] sm:$0xff]
    %v105 = vld [vmem:[#allocation8 + $0x18] sm:$0xff]
    %v106 = vld [vmem:[#allocation8 + $0x20] sm:$0xff]
    %v107 = vld [vmem:[#allocation8 + $0x28] sm:$0xff]
    %v108 = vld [vmem:[#allocation8 + $0x30] sm:$0xff]
    %v109 = vld [vmem:[#allocation8 + $0x38] sm:$0xff]
    %v110 = vld [vmem:[#allocation8 + $0x40] sm:$0xff]
    %v111 = vld [vmem:[#allocation8 + $0x48] sm:$0xff]
    %v112 = vld [vmem:[#allocation8 + $0x50] sm:$0xff]
    %v113 = vld [vmem:[#allocation8 + $0x58] sm:$0xff]
    %v114 = vld [vmem:[#allocation8 + $0x60] sm:$0xff]
    %v115 = vld [vmem:[#allocation8 + $0x68] sm:$0xff]
    %v116 = vld [vmem:[#allocation8 + $0x70] sm:$0xff]
    %v117 = vld [vmem:[#allocation8 + $0x78] sm:$0xff]
    %v118 = vld [vmem:[#allocation8 + $0x80] sm:$0xff]
    %v119 = vld [vmem:[#allocation8 + $0x88] sm:$0xff]
    %v120 = vld [vmem:[#allocation8 + $0x90] sm:$0xff]
    %v121 = vld [vmem:[#allocation8 + $0x98] sm:$0xff]
    %v122 = vld [vmem:[#allocation8 + $0xa0] sm:$0xff]
    %v123 = vld [vmem:[#allocation8 + $0xa8] sm:$0xff]
    %v124 = vld [vmem:[#allocation8 + $0xb0] sm:$0xff]
    %v125 = vld [vmem:[#allocation8 + $0xb8] sm:$0xff]
    %v126 = vld [vmem:[#allocation8 + $0xc0] sm:$0xff]
    %v127 = vld [vmem:[#allocation8 + $0xc8] sm:$0xff]
    %v128 = vld [vmem:[#allocation8 + $0xd0] sm:$0xff]
    %v129 = vld [vmem:[#allocation8 + $0xd8] sm:$0xff]
    %v130 = vld [vmem:[#allocation8 + $0xe0] sm:$0xff]
    %v131 = vld [vmem:[#allocation8 + $0xe8] sm:$0xff]
    %v132 = vld [vmem:[#allocation8 + $0xf0] sm:$0xff]
    %v133 = vld [vmem:[#allocation8 + $0xf8] sm:$0xff]
    %v134 = vld [vmem:[#allocation8 + $0x100] sm:$0xff]
    %v135 = vld [vmem:[#allocation8 + $0x108] sm:$0xff]
    %v136 = vld [vmem:[#allocation8 + $0x110] sm:$0xff]
    %v137 = vld [vmem:[#allocation8 + $0x118] sm:$0xff]
    %v138 = vld [vmem:[#allocation8 + $0x120] sm:$0xff]
    %v139 = vld [vmem:[#allocation8 + $0x128] sm:$0xff]
    %v140 = vld [vmem:[#allocation8 + $0x130] sm:$0xff]
    %v141 = vld [vmem:[#allocation8 + $0x138] sm:$0xff]
    %v142 = vld [vmem:[#allocation8 + $0x140] sm:$0xff]
    %v143 = vld [vmem:[#allocation8 + $0x148] sm:$0xff]
    %v144 = vld [vmem:[#allocation8 + $0x150] sm:$0xff]
    %v145 = vld [vmem:[#allocation8 + $0x158] sm:$0xff]
    %v146 = vld [vmem:[#allocation8 + $0x160] sm:$0xff]
    %v147 = vld [vmem:[#allocation8 + $0x168] sm:$0xff]
    %v148 = vld [vmem:[#allocation8 + $0x170] sm:$0xff]
    %v149 = vld [vmem:[#allocation8 + $0x178] sm:$0xff]
    %v150 = vld [vmem:[#allocation8 + $0x180] sm:$0xff]
    %v151 = vld [vmem:[#allocation8 + $0x188] sm:$0xff]
    %v152 = vld [vmem:[#allocation8 + $0x190] sm:$0xff]
    %v153 = vld [vmem:[#allocation8 + $0x198] sm:$0xff]
    %v154 = vld [vmem:[#allocation8 + $0x1a0] sm:$0xff]
    %v155 = vld [vmem:[#allocation8 + $0x1a8] sm:$0xff]
    %v156 = vld [vmem:[#allocation8 + $0x1b0] sm:$0xff]
    %v157 = vld [vmem:[#allocation8 + $0x1b8] sm:$0xff]
    %v158 = vld [vmem:[#allocation8 + $0x1c0] sm:$0xff]
    %v159 = vld [vmem:[#allocation8 + $0x1c8] sm:$0xff]
    %v160 = vld [vmem:[#allocation8 + $0x1d0] sm:$0xff]
    %v161 = vld [vmem:[#allocation8 + $0x1d8] sm:$0xff]
    %v162 = vld [vmem:[#allocation8 + $0x1e0] sm:$0xff]
    %v163 = vld [vmem:[#allocation8 + $0x1e8] sm:$0xff]
    %v164 = vld [vmem:[#allocation8 + $0x1f0] sm:$0xff]
    %v165 = vld [vmem:[#allocation8 + $0x1f8] sm:$0xff]
    %v166 = vld [vmem:[%s4] sm:$0x3]
    %v167 = vld [vmem:[#allocation10] sm:$0xff]
    %v168 = vld [vmem:[#allocation10 + $0x8] sm:$0xff]
    %v169 = vld [vmem:[#allocation10 + $0x10] sm:$0xff]
    %v170 = vld [vmem:[#allocation10 + $0x18] sm:$0xff]
    %v171 = vld [vmem:[#allocation10 + $0x20] sm:$0xff]
    %v172 = vld [vmem:[#allocation10 + $0x28] sm:$0xff]
    %v173 = vld [vmem:[#allocation10 + $0x30] sm:$0xff]
    %v174 = vld [vmem:[#allocation10 + $0x38] sm:$0xff]
    %v175 = vld [vmem:[#allocation10 + $0x40] sm:$0xff]
    %v176 = vld [vmem:[#allocation10 + $0x48] sm:$0xff]
    %v177 = vld [vmem:[#allocation10 + $0x50] sm:$0xff]
    %v178 = vld [vmem:[#allocation10 + $0x58] sm:$0xff]
    %v179 = vld [vmem:[#allocation10 + $0x60] sm:$0xff]
    %v180 = vld [vmem:[#allocation10 + $0x68] sm:$0xff]
    %v181 = vld [vmem:[#allocation10 + $0x70] sm:$0xff]
    %v182 = vld [vmem:[#allocation10 + $0x78] sm:$0xff]
    %v183 = vld [vmem:[#allocation10 + $0x80] sm:$0xff]
    %v184 = vld [vmem:[#allocation10 + $0x88] sm:$0xff]
    %v185 = vld [vmem:[#allocation10 + $0x90] sm:$0xff]
    %v186 = vld [vmem:[#allocation10 + $0x98] sm:$0xff]
    %v187 = vld [vmem:[#allocation10 + $0xa0] sm:$0xff]
    %v188 = vld [vmem:[#allocation10 + $0xa8] sm:$0xff]
    %v189 = vld [vmem:[#allocation10 + $0xb0] sm:$0xff]
    %v190 = vld [vmem:[#allocation10 + $0xb8] sm:$0xff]
    %v191 = vld [vmem:[#allocation10 + $0xc0] sm:$0xff]
    %v192 = vld [vmem:[#allocation10 + $0xc8] sm:$0xff]
    %v193 = vld [vmem:[#allocation10 + $0xd0] sm:$0xff]
    %v194 = vld [vmem:[#allocation10 + $0xd8] sm:$0xff]
    %v195 = vld [vmem:[#allocation10 + $0xe0] sm:$0xff]
    %v196 = vld [vmem:[#allocation10 + $0xe8] sm:$0xff]
    %v197 = vld [vmem:[#allocation10 + $0xf0] sm:$0xff]
    %v198 = vld [vmem:[#allocation10 + $0xf8] sm:$0xff]
    %v199 = vld [vmem:[%s6] sm:$0x1]
    %201 = vset.pattern.permute.xlu0 0
    %202 = vperm.xlu0 %201, %v99
    %v203 = vpop.permute.xlu0 %202
    %v206 = vperm.slane %v100, 0
    %v207 = vperm.slane %v100, 2
    %v210 = vperm.slane %v206, 0
    %v211 = vperm.slane %v207, 0
    %v212 = vmul.f32 %v203, %v210
    %v213 = vmul.f32 %v203, %v211
    %v215 = vperm.slane %v101, 0
    %v216 = vperm.slane %v101, 1
    %v219 = vadd.f32 %v215, %v212
    %v220 = vadd.f32 %v216, %v213
    %221 = vset.pattern.permute.xlu0 1
    %222 = vperm.xlu0 %221, %v99
    %v223 = vpop.permute.xlu0 %222
    %v225 = vperm.slane %v100, 1
    %v226 = vperm.slane %v100, 3
    %v229 = vperm.slane %v225, 1
    %v230 = vperm.slane %v226, 1
    %v231 = vmul.f32 %v223, %v229
    %v232 = vmul.f32 %v223, %v230
    %v233 = vadd.f32 %v219, %v231
    %v234 = vadd.f32 %v220, %v232
    %v235 = vtanh.pop %v233
    %v236 = vtanh.pop %v234
    %v238 = vperm.slane %v166, 0
    %v239 = vperm.slane %v166, 1
    %242 = vmatpush.msra.mxu0 %v132
    %243 = vmatpush.msra.mxu0 %v130
    %244 = vmatpush.msra.mxu0 %v128
    %245 = vmatpush.msra.mxu0 %v126
    %246 = vmatpush.msra.mxu0 %v124
    %247 = vmatpush.msra.mxu0 %v122
    %248 = vmatpush.msra.mxu0 %v120
    %249 = vmatpush.msra.mxu0 %v118
    %250 = vmatpush.msra.mxu0 %v116
    %251 = vmatpush.msra.mxu0 %v114
    %252 = vmatpush.msra.mxu0 %v112
    %253 = vmatpush.msra.mxu0 %v110
    %254 = vmatpush.msra.mxu0 %v108
    %255 = vmatpush.msra.mxu0 %v106
    %256 = vmatpush.msra.mxu0 %v104
    %257 = vmatpush.msra.mxu0 %v102
    %258 = vmatmul.f32.gmra.mxu0 %v235
    %v259 = vpop.f32.mrf.mxu0
    %v260 = vadd.f32 %v238, %v259
    %261 = vdwg.mxu0
    %262 = vmatpush.msra.mxu0 %v164
    %263 = vmatpush.msra.mxu0 %v162
    %264 = vmatpush.msra.mxu0 %v160
    %265 = vmatpush.msra.mxu0 %v158
    %266 = vmatpush.msra.mxu0 %v156
    %267 = vmatpush.msra.mxu0 %v154
    %268 = vmatpush.msra.mxu0 %v152
    %269 = vmatpush.msra.mxu0 %v150
    %270 = vmatpush.msra.mxu0 %v148
    %271 = vmatpush.msra.mxu0 %v146
    %272 = vmatpush.msra.mxu0 %v144
    %273 = vmatpush.msra.mxu0 %v142
    %274 = vmatpush.msra.mxu0 %v140
    %275 = vmatpush.msra.mxu0 %v138
    %276 = vmatpush.msra.mxu0 %v136
    %277 = vmatpush.msra.mxu0 %v134
    %278 = vmatmul.f32.gmra.mxu0 %v236
    %v279 = vpop.f32.mrf.mxu0
    %v280 = vadd.f32 %v260, %v279
    %281 = vdwg.mxu0
    %282 = vmatpush.msra.mxu0 %v133
    %283 = vmatpush.msra.mxu0 %v131
    %284 = vmatpush.msra.mxu0 %v129
    %285 = vmatpush.msra.mxu0 %v127
    %286 = vmatpush.msra.mxu0 %v125
    %287 = vmatpush.msra.mxu0 %v123
    %288 = vmatpush.msra.mxu0 %v121
    %289 = vmatpush.msra.mxu0 %v119
    %290 = vmatpush.msra.mxu0 %v117
    %291 = vmatpush.msra.mxu0 %v115
    %292 = vmatpush.msra.mxu0 %v113
    %293 = vmatpush.msra.mxu0 %v111
    %294 = vmatpush.msra.mxu0 %v109
    %295 = vmatpush.msra.mxu0 %v107
    %296 = vmatpush.msra.mxu0 %v105
    %297 = vmatpush.msra.mxu0 %v103
    %298 = vmatmul.f32.gmra.mxu0 %v235
    %v299 = vpop.f32.mrf.mxu0
    %v300 = vadd.f32 %v239, %v299
    %301 = vdwg.mxu0
    %302 = vmatpush.msra.mxu0 %v165
    %303 = vmatpush.msra.mxu0 %v163
    %304 = vmatpush.msra.mxu0 %v161
    %305 = vmatpush.msra.mxu0 %v159
    %306 = vmatpush.msra.mxu0 %v157
    %307 = vmatpush.msra.mxu0 %v155
    %308 = vmatpush.msra.mxu0 %v153
    %309 = vmatpush.msra.mxu0 %v151
    %310 = vmatpush.msra.mxu0 %v149
    %311 = vmatpush.msra.mxu0 %v147
    %312 = vmatpush.msra.mxu0 %v145
    %313 = vmatpush.msra.mxu0 %v143
    %314 = vmatpush.msra.mxu0 %v141
    %315 = vmatpush.msra.mxu0 %v139
    %316 = vmatpush.msra.mxu0 %v137
    %317 = vmatpush.msra.mxu0 %v135
    %318 = vmatmul.f32.gmra.mxu0 %v236
    %v319 = vpop.f32.mrf.mxu0
    %v320 = vadd.f32 %v300, %v319
    %321 = vdwg.mxu0
    %v322 = vtanh.pop %v280
    %v323 = vtanh.pop %v320
    %v325 = vperm.slane %v199, 0
    %327 = vmatpush.msra.mxu0 %v182
    %328 = vmatpush.msra.mxu0 %v181
    %329 = vmatpush.msra.mxu0 %v180
    %330 = vmatpush.msra.mxu0 %v179
    %331 = vmatpush.msra.mxu0 %v178
    %332 = vmatpush.msra.mxu0 %v177
    %333 = vmatpush.msra.mxu0 %v176
    %334 = vmatpush.msra.mxu0 %v175
    %335 = vmatpush.msra.mxu0 %v174
    %336 = vmatpush.msra.mxu0 %v173
    %337 = vmatpush.msra.mxu0 %v172
    %338 = vmatpush.msra.mxu0 %v171
    %339 = vmatpush.msra.mxu0 %v170
    %340 = vmatpush.msra.mxu0 %v169
    %341 = vmatpush.msra.mxu0 %v168
    %342 = vmatpush.msra.mxu0 %v167
    %343 = vmatmul.f32.gmra.mxu0 %v322
    %v344 = vpop.f32.mrf.mxu0
    %v345 = vadd.f32 %v325, %v344
    %346 = vdwg.mxu0
    %347 = vmatpush.msra.mxu0 %v198
    %348 = vmatpush.msra.mxu0 %v197
    %349 = vmatpush.msra.mxu0 %v196
    %350 = vmatpush.msra.mxu0 %v195
    %351 = vmatpush.msra.mxu0 %v194
    %352 = vmatpush.msra.mxu0 %v193
    %353 = vmatpush.msra.mxu0 %v192
    %354 = vmatpush.msra.mxu0 %v191
    %355 = vmatpush.msra.mxu0 %v190
    %356 = vmatpush.msra.mxu0 %v189
    %357 = vmatpush.msra.mxu0 %v188
    %358 = vmatpush.msra.mxu0 %v187
    %359 = vmatpush.msra.mxu0 %v186
    %360 = vmatpush.msra.mxu0 %v185
    %361 = vmatpush.msra.mxu0 %v184
    %362 = vmatpush.msra.mxu0 %v183
    %363 = vmatmul.f32.gmra.mxu0 %v323
    %v364 = vpop.f32.mrf.mxu0
    %v365 = vadd.f32 %v345, %v364
    %366 = vdwg.mxu0
    %367 = vst [vmem:[#allocation11] sm:$0xff] %v365
    // Predicated region
    $region50: #{tpu_custom_call.1} parent=1 // pred_check
      _
    $region51: #{tpu_custom_call.1} parent=1 // pred_check_branch
      %369 = sbr.rel (0) target = $region53
    $region52: #{tpu_custom_call.1} parent=1 // pred_region
      %371 = vsyncadd [#allocation4], 0
      %s373 = sshll.u32 [#allocation11], 4
      %s374 = int_to_ptr.vmem [resolvable:$true] %s373
      %s375 = sshll.u32 %s7, 4
      %s376 = int_to_ptr.hbm [resolvable:$true] %s375
      %378 = dma.vmem_to_hbm [thread:$0]  %s374, 128, %s376, [#allocation4]
    $region53: #{tpu_custom_call.1} parent=1 // pred_fallthru
      _
    // Predicated region
    $region54: #{tpu_custom_call.1} parent=1 // pred_check
      _
    $region55: #{tpu_custom_call.1} parent=1 // pred_check_branch
      %380 = sbr.rel (0) target = $region57
    $region56: #{tpu_custom_call.1} parent=1 // pred_region
      %382 = dma.done [#allocation4], 128
    $region57: #{tpu_custom_call.1} parent=1 // pred_fallthru
      _
    %383 = vsyncpa [#allocation3], 1
    %384 = vsyncpa [#allocation6], 1
    %385 = vsyncpa [#allocation9], 1
    %386 = vsyncpa [#allocation4], 1

</llo_original>
